<compile_context>
chip_gen: v7x
topology: tpu7x:2x2x1
jax: 0.10.0
libtpu: 0.0.40
codegen_flags: <defaults>
</compile_context>

<pallas_src>
import functools

import jax
import jax.numpy as jnp
from jax import lax
from jax.experimental import pallas as pl
from jax.experimental.pallas import tpu as pltpu


def _proto_loss_kernel(support_ref, query_ref, label_ref,      # inputs
                       loss_ref, logits_ref,                    # outputs
                       proto_ref, psq_ref,                      # scratch
                       *, dist_type, n_shots, nq_total, precision):
    f32 = jnp.float32
    pid = pl.program_id(0)
    last = pl.num_programs(0) - 1
    n_ways = proto_ref.shape[0]

    # ---- Prologue (grid step 0 only): prototypes, their squared norms, and
    # the loss accumulator.  Scratch persists across grid steps, so this work
    # is done exactly once regardless of how many query tiles follow.
    @pl.when(pid == 0)
    def _prologue():
        support = support_ref[...]                  # (n_shots*n_ways, emb)
        p, emb = support.shape
        # Averaging matrix A[w, s] = 1/n_shots iff support row s belongs to
        # way w (s % n_ways == w).  Built with unrolled equality tests
        # (n_shots is small & static); the mean becomes a tiny MXU matmul.
        way_ids = lax.broadcasted_iota(jnp.int32, (n_ways, p), 0)
        col_ids = lax.broadcasted_iota(jnp.int32, (n_ways, p), 1)
        mask = jnp.zeros((n_ways, p), f32)
        for s in range(n_shots):
            mask = mask + (col_ids == way_ids + s * n_ways).astype(f32)
        avg = (mask * f32(1.0 / n_shots)).astype(support.dtype)
        proto = lax.dot_general(                    # (n_ways, emb), f32
            avg, support, (((1,), (0,)), ((), ())),
            preferred_element_type=f32, precision=precision)
        # ||p||^2 produced directly as a lane-major (1, n_ways) row via a
        # ones-row matmul (avoids a sublane->lane relayout of a 1-D reduce).
        ones_row = jnp.ones((1, emb), f32)
        psq_ref[...] = lax.dot_general(             # (1, n_ways), f32
            ones_row, proto * proto, (((1,), (1,)), ((), ())),
            preferred_element_type=f32, precision=precision)
        proto_ref[...] = proto.astype(proto_ref.dtype)   # MXU dtype for Gram
        loss_ref[...] = jnp.zeros_like(loss_ref)

    query = query_ref[...]                          # (block_q, emb), native
    label = label_ref[...]                          # (block_q, 1), int32
    tq = query.shape[0]

    proto_mm = proto_ref[...]                       # (n_ways, emb), query dtype
    p_sq = psq_ref[...]                             # (1, n_ways), f32

    # ---- Gram term q @ proto^T: contract the lane dim of both operands so no
    # explicit transpose (XLU) copy is needed.
    qp = lax.dot_general(                           # (tq, n_ways), f32
        query, proto_mm, (((1,), (1,)), ((), ())),
        preferred_element_type=f32, precision=precision)

    # ---- Query row norms (lane reduce with keepdims).
    q32 = query.astype(f32)
    q_sq = jnp.sum(q32 * q32, axis=1, keepdims=True)            # (tq, 1)

    if dist_type == "squared_euclidean":
        # Clamp: cancellation can produce tiny negative distances.
        dist = jnp.maximum(q_sq + p_sq - 2.0 * qp, 0.0)
    elif dist_type == "cosine_similarity":
        eps = f32(1e-8)
        q_n = jnp.sqrt(q_sq)                                    # (tq, 1)
        p_n = jnp.sqrt(p_sq)                                    # (1, n_ways)
        denom = jnp.maximum(q_n * p_n, eps)   # matches F.cosine_similarity
        dist = qp * pl.reciprocal(denom, approx=True)
    else:
        raise ValueError(f"unknown dist_type: {dist_type}")

    logits = -dist                                              # (tq, n_ways)
    logits_ref[...] = logits.astype(logits_ref.dtype)

    # ---- Mean cross entropy: mean_i [ logsumexp(logits_i) - logits_i[label_i] ]
    m = jnp.max(logits, axis=1, keepdims=True)
    lse = m + jnp.log(jnp.sum(jnp.exp(logits - m), axis=1, keepdims=True))  # (tq,1)
    class_ids = lax.broadcasted_iota(jnp.int32, (tq, n_ways), 1)
    onehot = (class_ids == label).astype(f32)
    picked = jnp.sum(onehot * logits, axis=1, keepdims=True)                # (tq,1)
    per_row = lse - picked

    # Mask rows of a (possibly) partial last block.
    row_ids = pid * tq + lax.broadcasted_iota(jnp.int32, (tq, 1), 0)
    per_row = jnp.where(row_ids < nq_total, per_row, 0.0)
    tile_sum = jnp.sum(per_row, axis=0, keepdims=True)                      # (1,1)

    loss_ref[...] += tile_sum

    @pl.when(pid == last)
    def _finalize():
        loss_ref[...] = loss_ref[...] * f32(1.0 / nq_total)


def _round_up(x, m):
    return ((x + m - 1) // m) * m


def prototypical_loss(data, label, n_ways, n_shots, n_query,
                      dist_type="squared_euclidean", block_q=None,
                      precision=None):
    """Returns (loss, logits) matching PrototypicalLoss.forward."""
    if dist_type not in ("squared_euclidean", "cosine_similarity"):
        raise ValueError(f"unknown dist_type: {dist_type}")
    assert data.ndim == 2, "data must be [n_samples, emb_size]"
    n_support = n_shots * n_ways
    nq = n_query * n_ways
    assert data.shape[0] == n_support + nq
    emb = data.shape[1]

    # No dtype up-cast at the boundary: bf16 stays bf16 into the kernel/MXU.
    support = data[:n_support]                       # (n_support, emb)
    query = data[n_support:]                         # (nq, emb)
    label2d = jnp.asarray(label, jnp.int32).reshape(nq, 1)

    # Query tile: big enough to amortize per-step overhead (~0.35 us/step),
    # small enough that the double-buffered query block stays well under VMEM
    # on v7x (64 MiB).
    if block_q is None:
        bytes_per_row = emb * data.dtype.itemsize
        vmem_rows = max(16, (8 * 1024 * 1024) // max(1, 2 * bytes_per_row))
        block_q = min(nq, 512, vmem_rows)
    block_q = min(int(block_q), nq)
    if block_q < nq:
        block_q = min(_round_up(block_q, 16), nq)    # sublane-aligned blocks
    num_tiles = (nq + block_q - 1) // block_q

    kernel = functools.partial(
        _proto_loss_kernel, dist_type=dist_type,
        n_shots=n_shots, nq_total=nq, precision=precision)

    loss, logits = pl.pallas_call(
        kernel,
        grid=(num_tiles,),
        out_shape=(
            jax.ShapeDtypeStruct((1, 1), jnp.float32),        # loss
            jax.ShapeDtypeStruct((nq, n_ways), jnp.float32),  # logits
        ),
        in_specs=[
            pl.BlockSpec((n_support, emb), lambda i: (0, 0)),   # support (resident)
            pl.BlockSpec((block_q, emb), lambda i: (i, 0)),     # query (pipelined)
            pl.BlockSpec((block_q, 1), lambda i: (i, 0)),       # labels (pipelined)
        ],
        out_specs=(
            pl.BlockSpec((1, 1), lambda i: (0, 0)),             # loss accumulator
            pl.BlockSpec((block_q, n_ways), lambda i: (i, 0)),  # logits
        ),
        scratch_shapes=[
            pltpu.VMEM((n_ways, emb), data.dtype),   # prototypes (MXU dtype)
            pltpu.VMEM((1, n_ways), jnp.float32),    # prototype squared norms
        ],
        compiler_params=pltpu.CompilerParams(
            dimension_semantics=("arbitrary",)),  # loss block revisited each step
    )(support, query, label2d)

    return loss[0, 0], logits


def _reference(data, label, n_ways, n_shots, n_query, dist_type):
    # Pure-JAX mirror of the PyTorch module, for a sanity check.
    p = n_shots * n_ways
    support = data[:p].reshape(n_shots, n_ways, -1)
    query = data[p:]
    proto = support.mean(axis=0)
    if dist_type == "squared_euclidean":
        dist = jnp.sum((query[:, None, :] - proto[None, :, :]) ** 2, axis=2)
    else:
        eps = 1e-8
        num = jnp.sum(query[:, None, :] * proto[None, :, :], axis=2)
        qn = jnp.linalg.norm(query, axis=1, keepdims=True)
        pn = jnp.linalg.norm(proto, axis=1)
        dist = num / jnp.maximum(qn * pn[None, :], eps)
    logits = -dist
    lse = jax.scipy.special.logsumexp(logits, axis=1)
    picked = jnp.take_along_axis(logits, label[:, None].astype(jnp.int32), axis=1)[:, 0]
    loss = jnp.mean(lse - picked)
    return loss, logits


if __name__ == "__main__":
    # Small deterministic example: 4-way, 2-shot, 8 queries/class, emb=64.
    n_ways, n_shots, n_query, emb = 4, 2, 8, 64
    n_support = n_shots * n_ways          # 8
    nq = n_query * n_ways                 # 32

    key = jax.random.PRNGKey(0)
    data = jax.random.normal(key, (n_support + nq, emb), dtype=jnp.float32)
    # Query ordering is class-fastest (q11, q21, ...), per the reference docstring.
    label = jnp.tile(jnp.arange(n_ways, dtype=jnp.int32), n_query)

    # 1) squared euclidean, forced 2-step grid (exercises pipelined accumulation
    #    and the persistent prototype scratch across grid steps).
    loss, logits = prototypical_loss(data, label, n_ways, n_shots, n_query,
                                     dist_type="squared_euclidean", block_q=16)
    jax.block_until_ready((loss, logits))
    ref_loss, ref_logits = _reference(data, label, n_ways, n_shots, n_query,
                                      "squared_euclidean")
    # Tolerance sized for MXU contraction of the f32 Gram term at default
    # precision (bf16 passes); typical agreement is much tighter.
    assert jnp.allclose(logits, ref_logits, atol=3e-1, rtol=2e-3), "euclid logits mismatch"
    assert jnp.allclose(loss, ref_loss, atol=1.5e-1, rtol=2e-3), "euclid loss mismatch"

    # 2) cosine similarity, default (single-step) grid.
    loss_c, logits_c = prototypical_loss(data, label, n_ways, n_shots, n_query,
                                         dist_type="cosine_similarity")
    jax.block_until_ready((loss_c, logits_c))
    ref_loss_c, ref_logits_c = _reference(data, label, n_ways, n_shots, n_query,
                                          "cosine_similarity")
    assert jnp.allclose(logits_c, ref_logits_c, atol=2e-2, rtol=2e-2), "cosine logits mismatch"
    assert jnp.allclose(loss_c, ref_loss_c, atol=2e-2, rtol=2e-2), "cosine loss mismatch"

    # 3) bf16 pass-through (no wrapper up-cast; bf16 MXU matmul, f32 accumulate).
    data_bf16 = data.astype(jnp.bfloat16)
    loss_b, logits_b = prototypical_loss(data_bf16, label, n_ways, n_shots, n_query,
                                         dist_type="squared_euclidean", block_q=16)
    jax.block_until_ready((loss_b, logits_b))
    ref_loss_b, ref_logits_b = _reference(data_bf16.astype(jnp.float32), label,
                                          n_ways, n_shots, n_query,
                                          "squared_euclidean")
    assert jnp.allclose(logits_b, ref_logits_b, atol=5e-1, rtol=5e-3), "bf16 logits mismatch"
    assert jnp.allclose(loss_b, ref_loss_b, atol=3e-1, rtol=5e-3), "bf16 loss mismatch"

    print("KERNEL_OK")
</pallas_src>

<mosaic_0001>
module attributes {stable_mosaic.version = 11 : i64} {
  func.func @_proto_loss_kernel(%arg0: i32, %arg1: memref<8x64xf32, #tpu.memory_space<vmem>>, %arg2: memref<16x64xf32, #tpu.memory_space<vmem>>, %arg3: memref<16x1xi32, #tpu.memory_space<vmem>>, %arg4: memref<1x1xf32, #tpu.memory_space<vmem>>, %arg5: memref<16x4xf32, #tpu.memory_space<vmem>>, %arg6: memref<4x64xf32, #tpu.memory_space<vmem>>, %arg7: memref<1x4xf32, #tpu.memory_space<vmem>>) attributes {dimension_semantics = [#tpu.dimension_semantics<arbitrary>], iteration_bounds = array<i64: 2>, scalar_prefetch = 0 : i64, scratch_operands = 2 : i64, tpu.core_type = #tpu.core_type<tc>, window_params = [{pipeline_mode = #tpu.pipeline_mode<synchronous>, transform_indices = @transform_0, window_bounds = array<i64: 8, 64>}, {transform_indices = @transform_1, window_bounds = array<i64: 16, 64>}, {transform_indices = @transform_2, window_bounds = array<i64: 16, 1>}, {pipeline_mode = #tpu.pipeline_mode<synchronous>, transform_indices = @transform_3, window_bounds = array<i64: 1, 1>}, {transform_indices = @transform_4, window_bounds = array<i64: 16, 4>}]} {
    %c0_i32 = arith.constant 0 : i32
    %0 = arith.cmpi eq, %arg0, %c0_i32 : i32
    %1 = arith.extui %0 : i1 to i32
    %c0_i32_0 = arith.constant 0 : i32
    %2 = arith.cmpi ne, %1, %c0_i32_0 : i32
    scf.if %2 {
      %c0_24 = arith.constant 0 : index
      %c0_25 = arith.constant 0 : index
      %56 = vector.load %arg1[%c0_24, %c0_25] : memref<8x64xf32, #tpu.memory_space<vmem>>, vector<8x64xf32>
      %57 = tpu.iota {dimensions = array<i32: 0>} : vector<4x8xi32>
      %58 = tpu.iota {dimensions = array<i32: 1>} : vector<4x8xi32>
      %cst_26 = arith.constant 0.000000e+00 : f32
      %59 = vector.broadcast %cst_26 : f32 to vector<4x8xf32>
      %c0_i32_27 = arith.constant 0 : i32
      %60 = vector.broadcast %c0_i32_27 : i32 to vector<4x8xi32>
      %61 = arith.addi %57, %60 : vector<4x8xi32>
      %62 = arith.cmpi eq, %58, %61 : vector<4x8xi32>
      %63 = arith.extui %62 : vector<4x8xi1> to vector<4x8xi32>
      %64 = arith.sitofp %63 : vector<4x8xi32> to vector<4x8xf32>
      %65 = arith.addf %59, %64 : vector<4x8xf32>
      %c4_i32 = arith.constant 4 : i32
      %66 = vector.broadcast %c4_i32 : i32 to vector<4x8xi32>
      %67 = arith.addi %57, %66 : vector<4x8xi32>
      %68 = arith.cmpi eq, %58, %67 : vector<4x8xi32>
      %69 = arith.extui %68 : vector<4x8xi1> to vector<4x8xi32>
      %70 = arith.sitofp %69 : vector<4x8xi32> to vector<4x8xf32>
      %71 = arith.addf %65, %70 : vector<4x8xf32>
      %cst_28 = arith.constant 5.000000e-01 : f32
      %72 = vector.broadcast %cst_28 : f32 to vector<4x8xf32>
      %73 = arith.mulf %71, %72 : vector<4x8xf32>
      %cst_29 = arith.constant dense<0.000000e+00> : vector<4x64xf32>
      %74 = tpu.matmul %73, %56, %cst_29 {dimension_numbers = #tpu.dot_dimension_numbers<[1], [0], [0], [1], [0, 0, 1, 1], [], []>} : vector<4x8xf32>, vector<8x64xf32>, vector<4x64xf32> -> vector<4x64xf32>
      %cst_30 = arith.constant 1.000000e+00 : f32
      %75 = vector.broadcast %cst_30 : f32 to vector<1x64xf32>
      %76 = arith.mulf %74, %74 : vector<4x64xf32>
      %cst_31 = arith.constant dense<0.000000e+00> : vector<1x4xf32>
      %77 = tpu.matmul %75, %76, %cst_31 {dimension_numbers = #tpu.dot_dimension_numbers<[1], [1], [0], [0], [0, 0, 1, 0], [], []>} : vector<1x64xf32>, vector<4x64xf32>, vector<1x4xf32> -> vector<1x4xf32>
      %c0_32 = arith.constant 0 : index
      %c0_33 = arith.constant 0 : index
      %78 = vector.load %arg7[%c0_32, %c0_33] : memref<1x4xf32, #tpu.memory_space<vmem>>, vector<1x4xf32>
      tpu.vector_store %arg7[%c0_32, %c0_33], %77 {strides = array<i32>} : memref<1x4xf32, #tpu.memory_space<vmem>>, vector<1x4xf32>,
      %c0_34 = arith.constant 0 : index
      %c0_35 = arith.constant 0 : index
      %79 = vector.load %arg6[%c0_34, %c0_35] : memref<4x64xf32, #tpu.memory_space<vmem>>, vector<4x64xf32>
      tpu.vector_store %arg6[%c0_34, %c0_35], %74 {strides = array<i32>} : memref<4x64xf32, #tpu.memory_space<vmem>>, vector<4x64xf32>,
      %cst_36 = arith.constant 0.000000e+00 : f32
      %80 = vector.broadcast %cst_36 : f32 to vector<1x1xf32>
      %c0_37 = arith.constant 0 : index
      %c0_38 = arith.constant 0 : index
      %81 = vector.load %arg4[%c0_37, %c0_38] : memref<1x1xf32, #tpu.memory_space<vmem>>, vector<1x1xf32>
      tpu.vector_store %arg4[%c0_37, %c0_38], %80 {strides = array<i32>} : memref<1x1xf32, #tpu.memory_space<vmem>>, vector<1x1xf32>,
    } else {
    }
    %c0 = arith.constant 0 : index
    %c0_1 = arith.constant 0 : index
    %3 = vector.load %arg2[%c0, %c0_1] : memref<16x64xf32, #tpu.memory_space<vmem>>, vector<16x64xf32>
    %c0_2 = arith.constant 0 : index
    %c0_3 = arith.constant 0 : index
    %4 = vector.load %arg3[%c0_2, %c0_3] : memref<16x1xi32, #tpu.memory_space<vmem>>, vector<16x1xi32>
    %c0_4 = arith.constant 0 : index
    %c0_5 = arith.constant 0 : index
    %5 = vector.load %arg6[%c0_4, %c0_5] : memref<4x64xf32, #tpu.memory_space<vmem>>, vector<4x64xf32>
    %c0_6 = arith.constant 0 : index
    %c0_7 = arith.constant 0 : index
    %6 = vector.load %arg7[%c0_6, %c0_7] : memref<1x4xf32, #tpu.memory_space<vmem>>, vector<1x4xf32>
    %cst = arith.constant dense<0.000000e+00> : vector<16x4xf32>
    %7 = tpu.matmul %3, %5, %cst {dimension_numbers = #tpu.dot_dimension_numbers<[1], [1], [0], [0], [0, 0, 1, 0], [], []>} : vector<16x64xf32>, vector<4x64xf32>, vector<16x4xf32> -> vector<16x4xf32>
    %8 = arith.mulf %3, %3 : vector<16x64xf32>
    %cst_8 = arith.constant dense<0.000000e+00> : vector<16xf32>
    %9 = vector.multi_reduction <add>, %8, %cst_8 [1] : vector<16x64xf32> to vector<16xf32>
    %10 = vector.shape_cast %9 : vector<16xf32> to vector<16x1xf32>
    %11 = vector.broadcast %10 : vector<16x1xf32> to vector<16x4xf32>
    %12 = vector.broadcast %6 : vector<1x4xf32> to vector<16x4xf32>
    %13 = arith.addf %11, %12 : vector<16x4xf32>
    %cst_9 = arith.constant 2.000000e+00 : f32
    %14 = vector.broadcast %cst_9 : f32 to vector<16x4xf32>
    %15 = arith.mulf %14, %7 : vector<16x4xf32>
    %16 = arith.subf %13, %15 : vector<16x4xf32>
    %cst_10 = arith.constant 0.000000e+00 : f32
    %17 = vector.broadcast %cst_10 : f32 to vector<16x4xf32>
    %18 = arith.maximumf %16, %17 : vector<16x4xf32>
    %cst_11 = arith.constant 0.000000e+00 : f32
    %19 = vector.broadcast %cst_11 : f32 to vector<16x4xf32>
    %20 = arith.subf %19, %18 : vector<16x4xf32>
    %c0_12 = arith.constant 0 : index
    %c0_13 = arith.constant 0 : index
    %21 = vector.load %arg5[%c0_12, %c0_13] : memref<16x4xf32, #tpu.memory_space<vmem>>, vector<16x4xf32>
    tpu.vector_store %arg5[%c0_12, %c0_13], %20 {strides = array<i32>} : memref<16x4xf32, #tpu.memory_space<vmem>>, vector<16x4xf32>,
    %cst_14 = arith.constant dense<0xFF800000> : vector<16xf32>
    %22 = vector.multi_reduction <maximumf>, %20, %cst_14 [1] : vector<16x4xf32> to vector<16xf32>
    %23 = vector.shape_cast %22 : vector<16xf32> to vector<16x1xf32>
    %24 = vector.broadcast %23 : vector<16x1xf32> to vector<16x4xf32>
    %25 = arith.subf %20, %24 : vector<16x4xf32>
    %26 = math.exp %25 : vector<16x4xf32>
    %cst_15 = arith.constant dense<0.000000e+00> : vector<16xf32>
    %27 = vector.multi_reduction <add>, %26, %cst_15 [1] : vector<16x4xf32> to vector<16xf32>
    %28 = vector.shape_cast %27 : vector<16xf32> to vector<16x1xf32>
    %29 = math.log %28 : vector<16x1xf32>
    %30 = arith.addf %23, %29 : vector<16x1xf32>
    %31 = tpu.iota {dimensions = array<i32: 1>} : vector<16x4xi32>
    %32 = vector.broadcast %4 : vector<16x1xi32> to vector<16x4xi32>
    %33 = arith.cmpi eq, %31, %32 : vector<16x4xi32>
    %34 = arith.extui %33 : vector<16x4xi1> to vector<16x4xi32>
    %35 = arith.sitofp %34 : vector<16x4xi32> to vector<16x4xf32>
    %36 = arith.mulf %35, %20 : vector<16x4xf32>
    %cst_16 = arith.constant dense<0.000000e+00> : vector<16xf32>
    %37 = vector.multi_reduction <add>, %36, %cst_16 [1] : vector<16x4xf32> to vector<16xf32>
    %38 = vector.shape_cast %37 : vector<16xf32> to vector<16x1xf32>
    %39 = arith.subf %30, %38 : vector<16x1xf32>
    %c16_i32 = arith.constant 16 : i32
    %40 = arith.muli %arg0, %c16_i32 : i32
    %41 = tpu.iota {dimensions = array<i32: 0>} : vector<16x1xi32>
    %42 = vector.broadcast %40 : i32 to vector<16x1xi32>
    %43 = arith.addi %42, %41 : vector<16x1xi32>
    %c32_i32 = arith.constant 32 : i32
    %44 = vector.broadcast %c32_i32 : i32 to vector<16x1xi32>
    %45 = arith.cmpi slt, %43, %44 : vector<16x1xi32>
    %cst_17 = arith.constant 0.000000e+00 : f32
    %46 = vector.broadcast %cst_17 : f32 to vector<16x1xf32>
    %47 = arith.select %45, %39, %46 : vector<16x1xi1>, vector<16x1xf32>
    %cst_18 = arith.constant dense<0.000000e+00> : vector<1xf32>
    %48 = vector.multi_reduction <add>, %47, %cst_18 [0] : vector<16x1xf32> to vector<1xf32>
    %49 = vector.shape_cast %48 : vector<1xf32> to vector<1x1xf32>
    %c0_19 = arith.constant 0 : index
    %c0_20 = arith.constant 0 : index
    %50 = vector.load %arg4[%c0_19, %c0_20] : memref<1x1xf32, #tpu.memory_space<vmem>>, vector<1x1xf32>
    %51 = arith.addf %50, %49 : vector<1x1xf32>
    %c0_21 = arith.constant 0 : index
    %c0_22 = arith.constant 0 : index
    %52 = vector.load %arg4[%c0_21, %c0_22] : memref<1x1xf32, #tpu.memory_space<vmem>>, vector<1x1xf32>
    tpu.vector_store %arg4[%c0_21, %c0_22], %51 {strides = array<i32>} : memref<1x1xf32, #tpu.memory_space<vmem>>, vector<1x1xf32>,
    %c1_i32 = arith.constant 1 : i32
    %53 = arith.cmpi eq, %arg0, %c1_i32 : i32
    %54 = arith.extui %53 : i1 to i32
    %c0_i32_23 = arith.constant 0 : i32
    %55 = arith.cmpi ne, %54, %c0_i32_23 : i32
    scf.if %55 {
      %c0_24 = arith.constant 0 : index
      %c0_25 = arith.constant 0 : index
      %56 = vector.load %arg4[%c0_24, %c0_25] : memref<1x1xf32, #tpu.memory_space<vmem>>, vector<1x1xf32>
      %cst_26 = arith.constant 3.125000e-02 : f32
      %57 = vector.broadcast %cst_26 : f32 to vector<1x1xf32>
      %58 = arith.mulf %56, %57 : vector<1x1xf32>
      %c0_27 = arith.constant 0 : index
      %c0_28 = arith.constant 0 : index
      %59 = vector.load %arg4[%c0_27, %c0_28] : memref<1x1xf32, #tpu.memory_space<vmem>>, vector<1x1xf32>
      tpu.vector_store %arg4[%c0_27, %c0_28], %58 {strides = array<i32>} : memref<1x1xf32, #tpu.memory_space<vmem>>, vector<1x1xf32>,
    } else {
    }
    return
  }
  func.func @transform_0(%arg0: i32) -> (i32, i32) {
    %c0_i32 = arith.constant 0 : i32
    %c0_i32_0 = arith.constant 0 : i32
    %c0_i32_1 = arith.constant 0 : i32
    return %c0_i32, %c0_i32_0 : i32, i32
  }
  func.func @transform_1(%arg0: i32) -> (i32, i32) {
    %c0_i32 = arith.constant 0 : i32
    %c0_i32_0 = arith.constant 0 : i32
    return %arg0, %c0_i32 : i32, i32
  }
  func.func @transform_2(%arg0: i32) -> (i32, i32) {
    %c0_i32 = arith.constant 0 : i32
    %c0_i32_0 = arith.constant 0 : i32
    return %arg0, %c0_i32 : i32, i32
  }
  func.func @transform_3(%arg0: i32) -> (i32, i32) {
    %c0_i32 = arith.constant 0 : i32
    %c0_i32_0 = arith.constant 0 : i32
    %c0_i32_1 = arith.constant 0 : i32
    return %c0_i32, %c0_i32_0 : i32, i32
  }
  func.func @transform_4(%arg0: i32) -> (i32, i32) {
    %c0_i32 = arith.constant 0 : i32
    %c0_i32_0 = arith.constant 0 : i32
    return %arg0, %c0_i32 : i32, i32
  }
}

</mosaic_0001>

<llo_original>
// kernel: tpu_custom_call.1
$region0: #{tpu_custom_call.1}
  #allocation0 [shape = 'u32[]', space=smem, size = 0x4, offset = 0x4, fixed_abs, tag = 'smem constant byte address 0x4 - core index']
  #allocation1 [shape = 'u32[144,128]{1,0:T(1,128)}', space=vmem, size = 0x12000, scoped, tag = 'internal scratch']
  #allocation2 [shape = 'f32[4,64]{1,0:T(4,128)}', space=vmem, size = 0x800, scoped, tag = 'scratch operand']
  #allocation3 [shape = 'f32[1,4]{1,0:T(1,128)}', space=vmem, size = 0x200, scoped, tag = 'scratch operand']
  %s0 = inlined_call_operand.hbm [shape: f32[8,64], index: 0, kind: input, shape index: {}]
  %s1 = inlined_call_operand.vmem [shape: f32[32,64], index: 1, kind: input, shape index: {}]
  %s2 = inlined_call_operand.vmem [shape: s32[32,1], index: 2, kind: input, shape index: {}]
  %s3 = inlined_call_operand.hbm [shape: f32[1,1], index: 3, kind: output, shape index: {0}]
  %s4 = inlined_call_operand.vmem [shape: f32[32,4], index: 4, kind: output, shape index: {1}]
  %5 = xla_tuple %s3, %s4
  %s6 = sld [smem:[#allocation0]]
  $region65: #{tpu_custom_call.1} parent=0
    _
  %s8 = ssub.s32 1, %s6
  %s9 = scalar_select 0, %s8, %s6
  $region1: #{tpu_custom_call.1} parent=0
    #allocation4 [shape = 'u8[4096]{0}', space=vmem, size = 0x1000, scoped, tag = 'input window, operand 0, single buffered']
    #allocation5 [shape = 's32[2]{0}', space=sflag, size = 0x8, scoped, tag = 'scoped memory for tpu_custom_call.1']
    #allocation6 [shape = 's32[2]{0}', space=sflag, size = 0x8, scoped, tag = 'scoped memory for tpu_custom_call.1']
    #allocation7 [shape = 'u8[512]{0}', space=vmem, size = 0x400, scoped, tag = 'output window, operand 0, single buffered']
    %10 = vsyncpa [#allocation5], 0
    %11 = vsyncpa [#allocation6], 0
    loop: start=0, step=1, limit=4
    $region2: #{tpu_custom_call.1} parent=1 // loop_pre_header
      _
    $region3: #{tpu_custom_call.1} parent=1 // loop_header
      %s13 = sphi 0, %s17
      %p14 = scmp.ge.s32.totalorder %s13, 4
      %s21 = sphi 0, %s21
      %s23 = sphi 0, %s21
      %s24 = sphi 0, %s23
      %s38 = sphi 0, %s24
      %s44 = sphi 0, %s46
      %s47 = sphi 0, %s44
      %s48 = sphi 0, %s47
      %s64 = sphi 0, %s48
      %s70 = sphi 0, %s72
      %s73 = sphi 0, %s70
      %s74 = sphi 0, %s73
      %s90 = sphi 0, %s74
      %s94 = sphi 0, %s94
      %s96 = sphi 0, %s94
      %s97 = sphi 0, %s96
      %s111 = sphi 0, %s97
      %s117 = sphi 0, %s119
      %s120 = sphi 0, %s117
      %s121 = sphi 0, %s120
      %s137 = sphi 0, %s121
    $region4: #{tpu_custom_call.1} parent=1 // loop_header_branch
      %16 = sbr.rel (%p14) target = $region8
    $region5: #{tpu_custom_call.1} parent=1 // loop_body
      %s18 = ssub.s32 %s13, 1
      %s19 = ssub.s32 %s13, 2
      %s20 = sadd.s32 %s13, 1
      %s22 = sadd.s32 %s21, 1
      %p25 = scmp.eq.s32.totalorder %s13, 1
      %p26 = scmp.ne.s32.totalorder %s21, %s23
      %p27 = scmp.eq.s32.totalorder %s13, 0
      %p28 = por %p26, %p27
      %p29 = scmp.ne.s32.totalorder %s21, %s23
      %p30 = scmp.eq.s32.totalorder %s18, 1
      %p31 = por %p29, %p30
      %p32 = scmp.ne.s32.totalorder %s23, %s24
      %p33 = scmp.eq.s32.totalorder %s18, 0
      %p34 = por %p32, %p33
      %p35 = scmp.ne.s32.totalorder %s23, %s24
      %p36 = scmp.eq.s32.totalorder %s19, 1
      %p37 = por %p35, %p36
      %p39 = scmp.ne.s32.totalorder %s24, %s38
      %p40 = scmp.eq.s32.totalorder %s19, 0
      %p41 = por %p39, %p40
      %s42 = ssub.s32 %s13, %s20
      %p43 = scmp.eq.s32.totalorder %s42, 0
      %s45 = sadd.s32 %s44, 1
      %s46 = scalar_select %p43, %s44, %s45
      %p49 = pneg %p43
      %p50 = scmp.eq.s32.totalorder %s13, 1
      %p51 = por %p49, %p50
      %p52 = scmp.ne.s32.totalorder %s44, %s47
      %p53 = scmp.eq.s32.totalorder %s13, 0
      %p54 = por %p52, %p53
      %p55 = scmp.ne.s32.totalorder %s44, %s47
      %p56 = scmp.eq.s32.totalorder %s18, 1
      %p57 = por %p55, %p56
      %p58 = scmp.ne.s32.totalorder %s47, %s48
      %p59 = scmp.eq.s32.totalorder %s18, 0
      %p60 = por %p58, %p59
      %p61 = scmp.ne.s32.totalorder %s47, %s48
      %p62 = scmp.eq.s32.totalorder %s19, 1
      %p63 = por %p61, %p62
      %p65 = scmp.ne.s32.totalorder %s48, %s64
      %p66 = scmp.eq.s32.totalorder %s19, 0
      %p67 = por %p65, %p66
      %s68 = ssub.s32 %s13, %s20
      %p69 = scmp.eq.s32.totalorder %s68, 0
      %s71 = sadd.s32 %s70, 1
      %s72 = scalar_select %p69, %s70, %s71
      %p75 = pneg %p69
      %p76 = scmp.eq.s32.totalorder %s13, 1
      %p77 = por %p75, %p76
      %p78 = scmp.ne.s32.totalorder %s70, %s73
      %p79 = scmp.eq.s32.totalorder %s13, 0
      %p80 = por %p78, %p79
      %p81 = scmp.ne.s32.totalorder %s70, %s73
      %p82 = scmp.eq.s32.totalorder %s18, 1
      %p83 = por %p81, %p82
      %p84 = scmp.ne.s32.totalorder %s73, %s74
      %p85 = scmp.eq.s32.totalorder %s18, 0
      %p86 = por %p84, %p85
      %p87 = scmp.ne.s32.totalorder %s73, %s74
      %p88 = scmp.eq.s32.totalorder %s19, 1
      %p89 = por %p87, %p88
      %p91 = scmp.ne.s32.totalorder %s74, %s90
      %p92 = scmp.eq.s32.totalorder %s19, 0
      %p93 = por %p91, %p92
      %s95 = sadd.s32 %s94, 1
      %p98 = scmp.eq.s32.totalorder %s13, 1
      %p99 = scmp.ne.s32.totalorder %s94, %s96
      %p100 = scmp.eq.s32.totalorder %s13, 0
      %p101 = por %p99, %p100
      %p102 = scmp.ne.s32.totalorder %s94, %s96
      %p103 = scmp.eq.s32.totalorder %s18, 1
      %p104 = por %p102, %p103
      %p105 = scmp.ne.s32.totalorder %s96, %s97
      %p106 = scmp.eq.s32.totalorder %s18, 0
      %p107 = por %p105, %p106
      %p108 = scmp.ne.s32.totalorder %s96, %s97
      %p109 = scmp.eq.s32.totalorder %s19, 1
      %p110 = por %p108, %p109
      %p112 = scmp.ne.s32.totalorder %s97, %s111
      %p113 = scmp.eq.s32.totalorder %s19, 0
      %p114 = por %p112, %p113
      %s115 = ssub.s32 %s13, %s20
      %p116 = scmp.eq.s32.totalorder %s115, 0
      %s118 = sadd.s32 %s117, 1
      %s119 = scalar_select %p116, %s117, %s118
      %p122 = pneg %p116
      %p123 = scmp.eq.s32.totalorder %s13, 1
      %p124 = por %p122, %p123
      %p125 = scmp.ne.s32.totalorder %s117, %s120
      %p126 = scmp.eq.s32.totalorder %s13, 0
      %p127 = por %p125, %p126
      %p128 = scmp.ne.s32.totalorder %s117, %s120
      %p129 = scmp.eq.s32.totalorder %s18, 1
      %p130 = por %p128, %p129
      %p131 = scmp.ne.s32.totalorder %s120, %s121
      %p132 = scmp.eq.s32.totalorder %s18, 0
      %p133 = por %p131, %p132
      %p134 = scmp.ne.s32.totalorder %s120, %s121
      %p135 = scmp.eq.s32.totalorder %s19, 1
      %p136 = por %p134, %p135
      %p138 = scmp.ne.s32.totalorder %s121, %s137
      %p139 = scmp.eq.s32.totalorder %s19, 0
      %p140 = por %p138, %p139
      %p141 = scmp.le.s32.totalorder 1, %s13
      %p142 = scmp.lt.s32.totalorder %s13, 3
      %p143 = pnand %p141, %p142
      %p144 = pneg %p143
      // Predicated region
      $region9: #{tpu_custom_call.1} parent=5 // pred_check
        _
      $region10: #{tpu_custom_call.1} parent=5 // pred_check_branch
        %146 = sbr.rel (%p143) target = $region12
      $region11: #{tpu_custom_call.1} parent=5 // pred_region
        %s147 = ssub.s32 %s13, 1
        // Predicated region
        $region13: #{tpu_custom_call.1} parent=11 // pred_check
          %p148 = pneg %p34
        $region14: #{tpu_custom_call.1} parent=11 // pred_check_branch
          %150 = sbr.rel (%p148) target = $region16
        $region15: #{tpu_custom_call.1} parent=11 // pred_region
          %s152 = ssub.s32 128, 128
          %153 = vsyncadd [#allocation5], %s152
          %s155 = sshll.u32 [#allocation4], 4
          %s156 = int_to_ptr.vmem [resolvable:$true] %s155
          %158 = dma.hbm_to_vmem [thread:$0]  %s0, 128, %s156, [#allocation5]
        $region16: #{tpu_custom_call.1} parent=11 // pred_fallthru
          _
      $region12: #{tpu_custom_call.1} parent=5 // pred_fallthru
        _
      %p159 = scmp.lt.s32.totalorder %s13, 2
      // Predicated region
      $region17: #{tpu_custom_call.1} parent=5 // pred_check
        %p160 = pneg %p159
      $region18: #{tpu_custom_call.1} parent=5 // pred_check_branch
        %162 = sbr.rel (%p160) target = $region20
      $region19: #{tpu_custom_call.1} parent=5 // pred_region
        // Predicated region
        $region21: #{tpu_custom_call.1} parent=19 // pred_check
          %p163 = pneg %p54
        $region22: #{tpu_custom_call.1} parent=19 // pred_check_branch
          %165 = sbr.rel (%p163) target = $region24
        $region23: #{tpu_custom_call.1} parent=19 // pred_region
          %s166 = smul.u32 2, %s13
          %p167 = scmp.lt.s32.totalorder %s166, 3
          %s168 = scalar_select %p167, %s166, 3
          %s169 = smul.addr %s168, 8
          %s170 = scalar_lea.vmem %s1, %s169
          %s171 = smul.u32 2, %s13
        $region24: #{tpu_custom_call.1} parent=19 // pred_fallthru
          _
        // Predicated region
        $region25: #{tpu_custom_call.1} parent=19 // pred_check
          %p172 = pneg %p80
        $region26: #{tpu_custom_call.1} parent=19 // pred_check_branch
          %174 = sbr.rel (%p172) target = $region28
        $region27: #{tpu_custom_call.1} parent=19 // pred_region
          %s175 = smul.u32 2, %s13
          %p176 = scmp.lt.s32.totalorder %s175, 3
          %s177 = scalar_select %p176, %s175, 3
          %s178 = smul.addr %s177, 8
          %s179 = scalar_lea.vmem %s2, %s178
          %s180 = smul.u32 2, %s13
        $region28: #{tpu_custom_call.1} parent=19 // pred_fallthru
          _
      $region20: #{tpu_custom_call.1} parent=5 // pred_fallthru
        _
      %p181 = scmp.le.s32.totalorder 1, %s13
      %p182 = scmp.lt.s32.totalorder %s13, 3
      %p183 = pnand %p181, %p182
      %p184 = pneg %p183
      // Predicated region
      $region29: #{tpu_custom_call.1} parent=5 // pred_check
        _
      $region30: #{tpu_custom_call.1} parent=5 // pred_check_branch
        %186 = sbr.rel (%p183) target = $region32
      $region31: #{tpu_custom_call.1} parent=5 // pred_region
        %s187 = ssub.s32 %s13, 1
        // Predicated region
        $region33: #{tpu_custom_call.1} parent=31 // pred_check
          %p188 = pneg %p34
        $region34: #{tpu_custom_call.1} parent=31 // pred_check_branch
          %190 = sbr.rel (%p188) target = $region36
        $region35: #{tpu_custom_call.1} parent=31 // pred_region
          %191 = dma.done [#allocation5], 128
        $region36: #{tpu_custom_call.1} parent=31 // pred_fallthru
          _
        %p192 = pneg %p34
        %p193 = pneg %p31
        %s194 = smul.u32 2, %s18
        %p195 = scmp.lt.s32.totalorder %s194, 3
        %s196 = scalar_select %p195, %s194, 3
        %s197 = smul.addr %s196, 8
        %s198 = scalar_lea.vmem %s1, %s197
        %p199 = pneg %p60
        %p200 = pneg %p57
        %s201 = smul.u32 2, %s18
        %p202 = scmp.lt.s32.totalorder %s201, 3
        %s203 = scalar_select %p202, %s201, 3
        %s204 = smul.addr %s203, 8
        %s205 = scalar_lea.vmem %s2, %s204
        %p206 = pneg %p86
        %p207 = pneg %p83
        %p208 = pneg %p107
        %p209 = pneg %p104
        %p210 = pneg %p133
        %p211 = pneg %p130
        %s212 = smul.u32 2, %s18
        %p213 = scmp.lt.s32.totalorder %s212, 3
        %s214 = scalar_select %p213, %s212, 3
        %s215 = smul.addr %s214, 8
        %s216 = scalar_lea.vmem %s4, %s215
        %s217 = smul.u32 2, %s18
        %p218 = scmp.lt.s32.totalorder %s217, 3
        %s219 = scalar_select %p218, %s217, 3
        %s220 = smul.addr %s219, 8
        %s221 = scalar_lea.vmem %s1, %s220
        %s222 = smul.u32 2, %s18
        %s223 = smul.u32 2, %s18
        %p224 = scmp.lt.s32.totalorder %s223, 3
        %s225 = scalar_select %p224, %s223, 3
        %s226 = smul.addr %s225, 8
        %s227 = scalar_lea.vmem %s2, %s226
        %s228 = smul.u32 2, %s18
        %s229 = smul.u32 2, %s18
        %p230 = scmp.lt.s32.totalorder %s229, 3
        %s231 = scalar_select %p230, %s229, 3
        %s232 = smul.addr %s231, 8
        %s233 = scalar_lea.vmem %s4, %s232
        %s234 = smul.u32 2, %s18
        %p235 = scmp.eq.s32.totalorder %s18, 0
        // Predicated region
        $region37: #{tpu_custom_call.1} parent=31 // pred_check
          %p236 = pneg %p235
        $region38: #{tpu_custom_call.1} parent=31 // pred_check_branch
          %238 = sbr.rel (%p236) target = $region40
        $region39: #{tpu_custom_call.1} parent=31 // pred_region
          %v239 = vld [vmem:[#allocation4] sm:$0xff]
          %v240 = vlaneseq
          %v241 = vshrl.u32 %v240, 7
          %v242 = vlaneseq
          %v243 = vand.u32 %v242, 127
          %vm244 = vcmp.eq.s32.totalorder %v243, %v241
          %v245 = vsel %vm244, 1, 0
          %v246 = vcvt.s32.f32 %v245
          %v247 = vadd.f32 %v246, 0.0
          %v248 = vadd.s32 %v241, 4
          %vm249 = vcmp.eq.s32.totalorder %v243, %v248
          %v250 = vsel %vm249, 1, 0
          %v251 = vcvt.s32.f32 %v250
          %v252 = vadd.f32 %v247, %v251
          %v253 = vmul.f32 %v252, 0.5
          %vm254 = vcmask 64512
          %v256 = vsel %vm254, %v253, 0
          %258 = vmatprep.subr.mxu0 0.0
          %259 = vmatpush1.msra.mxu0 %v239
          %260 = vmatprep.subr.mxu0 0.0
          %261 = vmatpush1.msra.mxu0 0.0
          %262 = vmatprep.subr.mxu0 0.0
          %263 = vmatpush1.msra.mxu0 0.0
          %264 = vmatprep.subr.mxu0 0.0
          %265 = vmatpush1.msra.mxu0 0.0
          %266 = vmatprep.subr.mxu0 0.0
          %267 = vmatpush1.msra.mxu0 0.0
          %268 = vmatprep.subr.mxu0 0.0
          %269 = vmatpush1.msra.mxu0 0.0
          %270 = vmatprep.subr.mxu0 0.0
          %271 = vmatpush1.msra.mxu0 0.0
          %272 = vmatprep.subr.mxu0 0.0
          %273 = vmatpush1.msra.mxu0 0.0
          %274 = vmatprep.subr.mxu0 0.0
          %275 = vmatpush1.msra.mxu0 0.0
          %276 = vmatprep.subr.mxu0 0.0
          %277 = vmatpush1.msra.mxu0 0.0
          %278 = vmatprep.subr.mxu0 0.0
          %279 = vmatpush1.msra.mxu0 0.0
          %280 = vmatprep.subr.mxu0 0.0
          %281 = vmatpush1.msra.mxu0 0.0
          %282 = vmatprep.subr.mxu0 0.0
          %283 = vmatpush1.msra.mxu0 0.0
          %284 = vmatprep.subr.mxu0 0.0
          %285 = vmatpush1.msra.mxu0 0.0
          %286 = vmatprep.subr.mxu0 0.0
          %287 = vmatpush1.msra.mxu0 0.0
          %288 = vmatprep.subr.mxu0 0.0
          %289 = vmatpush1.msra.mxu0 0.0
          %290 = vmatprep.subr.mxu0 0.0
          %291 = vmatpush1.msra.mxu0 0.0
          %292 = vmatprep.subr.mxu0 0.0
          %293 = vmatpush1.msra.mxu0 0.0
          %294 = vmatprep.subr.mxu0 0.0
          %295 = vmatpush1.msra.mxu0 0.0
          %296 = vmatprep.subr.mxu0 0.0
          %297 = vmatpush1.msra.mxu0 0.0
          %298 = vmatprep.subr.mxu0 0.0
          %299 = vmatpush1.msra.mxu0 0.0
          %300 = vmatprep.subr.mxu0 0.0
          %301 = vmatpush1.msra.mxu0 0.0
          %302 = vmatprep.subr.mxu0 0.0
          %303 = vmatpush1.msra.mxu0 0.0
          %304 = vmatprep.subr.mxu0 0.0
          %305 = vmatpush1.msra.mxu0 0.0
          %306 = vmatprep.subr.mxu0 0.0
          %307 = vmatpush1.msra.mxu0 0.0
          %308 = vmatprep.subr.mxu0 0.0
          %309 = vmatpush1.msra.mxu0 0.0
          %310 = vmatprep.subr.mxu0 0.0
          %311 = vmatpush1.msra.mxu0 0.0
          %312 = vmatprep.subr.mxu0 0.0
          %313 = vmatpush1.msra.mxu0 0.0
          %314 = vmatprep.subr.mxu0 0.0
          %315 = vmatpush1.msra.mxu0 0.0
          %316 = vmatprep.subr.mxu0 0.0
          %317 = vmatpush1.msra.mxu0 0.0
          %318 = vmatprep.subr.mxu0 0.0
          %319 = vmatpush1.msra.mxu0 0.0
          %320 = vmatprep.subr.mxu0 0.0
          %321 = vmatpush1.msra.mxu0 0.0
          %322 = vmatprep.mubr.f32.mxu0 0.0
          %323 = vmatmul.mubr.f32.gmra.mrb[0].mxu0 %v256
          %v324 = vpop.f32.mrb[0].mxu0
          %v325 = vadd.f32 0.0, %v324
          %v326 = vpop.f32.mrb[0].mxu0
          %327 = vdwg.mxu0
          %v328 = vmul.f32 %v325, %v325
          %vm329 = vcmask 523264
          %v331 = vsel %vm329, 1.0, 0
          %v334 = vsel %vm329, %v328, 0
          %336 = vmatprep.subr.mxu0 0.0
          %337 = vmatpush1.xpose.msra.mxu0 %v334
          %338 = vmatprep.subr.mxu0 0.0
          %339 = vmatpush1.xpose.msra.mxu0 0.0
          %340 = vmatprep.subr.mxu0 0.0
          %341 = vmatpush1.xpose.msra.mxu0 0.0
          %342 = vmatprep.subr.mxu0 0.0
          %343 = vmatpush1.xpose.msra.mxu0 0.0
          %344 = vmatprep.subr.mxu0 0.0
          %345 = vmatpush1.xpose.msra.mxu0 0.0
          %346 = vmatprep.subr.mxu0 0.0
          %347 = vmatpush1.xpose.msra.mxu0 0.0
          %348 = vmatprep.subr.mxu0 0.0
          %349 = vmatpush1.xpose.msra.mxu0 0.0
          %350 = vmatprep.subr.mxu0 0.0
          %351 = vmatpush1.xpose.msra.mxu0 0.0
          %352 = vmatprep.subr.mxu0 0.0
          %353 = vmatpush1.xpose.msra.mxu0 0.0
          %354 = vmatprep.subr.mxu0 0.0
          %355 = vmatpush1.xpose.msra.mxu0 0.0
          %356 = vmatprep.subr.mxu0 0.0
          %357 = vmatpush1.xpose.msra.mxu0 0.0
          %358 = vmatprep.subr.mxu0 0.0
          %359 = vmatpush1.xpose.msra.mxu0 0.0
          %360 = vmatprep.subr.mxu0 0.0
          %361 = vmatpush1.xpose.msra.mxu0 0.0
          %362 = vmatprep.subr.mxu0 0.0
          %363 = vmatpush1.xpose.msra.mxu0 0.0
          %364 = vmatprep.subr.mxu0 0.0
          %365 = vmatpush1.xpose.msra.mxu0 0.0
          %366 = vmatprep.subr.mxu0 0.0
          %367 = vmatpush1.xpose.msra.mxu0 0.0
          %368 = vmatprep.subr.mxu0 0.0
          %369 = vmatpush1.xpose.msra.mxu0 0.0
          %370 = vmatprep.subr.mxu0 0.0
          %371 = vmatpush1.xpose.msra.mxu0 0.0
          %372 = vmatprep.subr.mxu0 0.0
          %373 = vmatpush1.xpose.msra.mxu0 0.0
          %374 = vmatprep.subr.mxu0 0.0
          %375 = vmatpush1.xpose.msra.mxu0 0.0
          %376 = vmatprep.subr.mxu0 0.0
          %377 = vmatpush1.xpose.msra.mxu0 0.0
          %378 = vmatprep.subr.mxu0 0.0
          %379 = vmatpush1.xpose.msra.mxu0 0.0
          %380 = vmatprep.subr.mxu0 0.0
          %381 = vmatpush1.xpose.msra.mxu0 0.0
          %382 = vmatprep.subr.mxu0 0.0
          %383 = vmatpush1.xpose.msra.mxu0 0.0
          %384 = vmatprep.subr.mxu0 0.0
          %385 = vmatpush1.xpose.msra.mxu0 0.0
          %386 = vmatprep.subr.mxu0 0.0
          %387 = vmatpush1.xpose.msra.mxu0 0.0
          %388 = vmatprep.subr.mxu0 0.0
          %389 = vmatpush1.xpose.msra.mxu0 0.0
          %390 = vmatprep.subr.mxu0 0.0
          %391 = vmatpush1.xpose.msra.mxu0 0.0
          %392 = vmatprep.subr.mxu0 0.0
          %393 = vmatpush1.xpose.msra.mxu0 0.0
          %394 = vmatprep.subr.mxu0 0.0
          %395 = vmatpush1.xpose.msra.mxu0 0.0
          %396 = vmatprep.subr.mxu0 0.0
          %397 = vmatpush1.xpose.msra.mxu0 0.0
          %398 = vmatprep.subr.mxu0 0.0
          %399 = vmatpush1.xpose.msra.mxu0 0.0
          %400 = vmatprep.mubr.f32.mxu0 0.0
          %401 = vmatmul.mubr.f32.gmra.mrb[0].mxu0 %v331
          %v402 = vpop.f32.mrb[0].mxu0
          %v403 = vadd.f32 0.0, %v402
          %v404 = vpop.f32.mrb[0].mxu0
          %405 = vdwg.mxu0
          %vm406 = vcmask 24576
          %407 = vst.msk [vmem:[#allocation3] sm:$0x1] %vm406, %v403
          %vm408 = vcmask 519168
          %409 = vst.msk [vmem:[#allocation2] sm:$0xf] %vm408, %v325
          %vm410 = vcmask 0
          %411 = vst.msk [vmem:[#allocation7] sm:$0x1] %vm410, 0.0
        $region40: #{tpu_custom_call.1} parent=31 // pred_fallthru
          _
        %v412 = vld [vmem:[%s221] sm:$0xff]
        %v413 = vld [vmem:[%s221 + $0x8] sm:$0xff]
        %v414 = vld [vmem:[%s227] sm:$0xff]
        %v415 = vld [vmem:[%s227 + $0x8] sm:$0xff]
        %v416 = vld [vmem:[#allocation2] sm:$0xf]
        %v417 = vld [vmem:[#allocation3] sm:$0x1]
        %vm418 = vcmask 523264
        %v420 = vsel %vm418, %v412, 0
        %v423 = vsel %vm418, %v413, 0
        %v426 = vsel %vm418, %v416, 0
        %428 = vmatprep.subr.mxu0 0.0
        %429 = vmatpush1.xpose.msra.mxu0 %v426
        %430 = vmatprep.subr.mxu0 0.0
        %431 = vmatpush1.xpose.msra.mxu0 0.0
        %432 = vmatprep.subr.mxu0 0.0
        %433 = vmatpush1.xpose.msra.mxu0 0.0
        %434 = vmatprep.subr.mxu0 0.0
        %435 = vmatpush1.xpose.msra.mxu0 0.0
        %436 = vmatprep.subr.mxu0 0.0
        %437 = vmatpush1.xpose.msra.mxu0 0.0
        %438 = vmatprep.subr.mxu0 0.0
        %439 = vmatpush1.xpose.msra.mxu0 0.0
        %440 = vmatprep.subr.mxu0 0.0
        %441 = vmatpush1.xpose.msra.mxu0 0.0
        %442 = vmatprep.subr.mxu0 0.0
        %443 = vmatpush1.xpose.msra.mxu0 0.0
        %444 = vmatprep.subr.mxu0 0.0
        %445 = vmatpush1.xpose.msra.mxu0 0.0
        %446 = vmatprep.subr.mxu0 0.0
        %447 = vmatpush1.xpose.msra.mxu0 0.0
        %448 = vmatprep.subr.mxu0 0.0
        %449 = vmatpush1.xpose.msra.mxu0 0.0
        %450 = vmatprep.subr.mxu0 0.0
        %451 = vmatpush1.xpose.msra.mxu0 0.0
        %452 = vmatprep.subr.mxu0 0.0
        %453 = vmatpush1.xpose.msra.mxu0 0.0
        %454 = vmatprep.subr.mxu0 0.0
        %455 = vmatpush1.xpose.msra.mxu0 0.0
        %456 = vmatprep.subr.mxu0 0.0
        %457 = vmatpush1.xpose.msra.mxu0 0.0
        %458 = vmatprep.subr.mxu0 0.0
        %459 = vmatpush1.xpose.msra.mxu0 0.0
        %460 = vmatprep.subr.mxu0 0.0
        %461 = vmatpush1.xpose.msra.mxu0 0.0
        %462 = vmatprep.subr.mxu0 0.0
        %463 = vmatpush1.xpose.msra.mxu0 0.0
        %464 = vmatprep.subr.mxu0 0.0
        %465 = vmatpush1.xpose.msra.mxu0 0.0
        %466 = vmatprep.subr.mxu0 0.0
        %467 = vmatpush1.xpose.msra.mxu0 0.0
        %468 = vmatprep.subr.mxu0 0.0
        %469 = vmatpush1.xpose.msra.mxu0 0.0
        %470 = vmatprep.subr.mxu0 0.0
        %471 = vmatpush1.xpose.msra.mxu0 0.0
        %472 = vmatprep.subr.mxu0 0.0
        %473 = vmatpush1.xpose.msra.mxu0 0.0
        %474 = vmatprep.subr.mxu0 0.0
        %475 = vmatpush1.xpose.msra.mxu0 0.0
        %476 = vmatprep.subr.mxu0 0.0
        %477 = vmatpush1.xpose.msra.mxu0 0.0
        %478 = vmatprep.subr.mxu0 0.0
        %479 = vmatpush1.xpose.msra.mxu0 0.0
        %480 = vmatprep.subr.mxu0 0.0
        %481 = vmatpush1.xpose.msra.mxu0 0.0
        %482 = vmatprep.subr.mxu0 0.0
        %483 = vmatpush1.xpose.msra.mxu0 0.0
        %484 = vmatprep.subr.mxu0 0.0
        %485 = vmatpush1.xpose.msra.mxu0 0.0
        %486 = vmatprep.subr.mxu0 0.0
        %487 = vmatpush1.xpose.msra.mxu0 0.0
        %488 = vmatprep.subr.mxu0 0.0
        %489 = vmatpush1.xpose.msra.mxu0 0.0
        %490 = vmatprep.subr.mxu0 0.0
        %491 = vmatpush1.xpose.msra.mxu0 0.0
        %492 = vmatprep.mubr.f32.mxu0 0.0
        %493 = vmatmul.mubr.f32.gmra.mrb[0].mxu0 %v420
        %v494 = vpop.f32.mrb[0].mxu0
        %v495 = vadd.f32 0.0, %v494
        %v496 = vpop.f32.mrb[0].mxu0
        %497 = vmatprep.mubr.f32.mxu0 0.0
        %498 = vmatmul.mubr.f32.gmra.mrb[0].mxu0 %v423
        %v499 = vpop.f32.mrb[0].mxu0
        %v500 = vadd.f32 0.0, %v499
        %v501 = vpop.f32.mrb[0].mxu0
        %502 = vdwg.mxu0
        %v503 = vmul.f32 %v412, %v412
        %v504 = vmul.f32 %v413, %v413
        %v505 = vsel %vm418, %v503, 0.0
        %506 = vadd.xlane.f32.xlu0 %v505
        %v507 = vpop.xlane.xlu0 %506
        %v508 = vsel %vm418, %v504, 0.0
        %509 = vadd.xlane.f32.xlu0 %v508
        %v510 = vpop.xlane.xlu0 %509
        %v512 = vlaneseq
        %v513 = vshrl.u32 %v512, 7
        %v514 = vsub.s32 0, %v513
        %v515 = vrot.slane %v417, %v514
        %v517 = vadd.f32 %v507, %v515
        %v518 = vadd.f32 %v510, %v515
        %v519 = vmul.f32 %v495, 2.0
        %v520 = vmul.f32 %v500, 2.0
        %v521 = vsub.f32 %v517, %v519
        %v522 = vsub.f32 %v518, %v520
        %v523 = vmax.f32 %v521, 0.0
        %v524 = vmax.f32 %v522, 0.0
        %v525 = vsub.f32 0.0, %v523
        %v526 = vsub.f32 0.0, %v524
        %vm527 = vcmask 31744
        %528 = vst.msk [vmem:[%s233] sm:$0xff] %vm527, %v525
        %529 = vst.msk [vmem:[%s233 + $0x8] sm:$0xff] %vm527, %v526
        %v530 = vsel %vm527, %v525, -inf
        %531 = vmax.xlane.f32.xlu0 %v530
        %v532 = vpop.xlane.xlu0 %531
        %v533 = vsel %vm527, %v526, -inf
        %534 = vmax.xlane.f32.xlu0 %v533
        %v535 = vpop.xlane.xlu0 %534
        %v536 = vsub.f32 %v525, %v532
        %v537 = vsub.f32 %v526, %v535
        %v538 = vmul.f32 %v536, 1.442695
        %v539 = vpow.pop %v538
        %v540 = vmul.f32 %v537, 1.442695
        %v541 = vpow.pop %v540
        %v542 = vsel %vm527, %v539, 0.0
        %543 = vadd.xlane.f32.xlu0 %v542
        %v544 = vpop.xlane.xlu0 %543
        %v545 = vsel %vm527, %v541, 0.0
        %546 = vadd.xlane.f32.xlu0 %v545
        %v547 = vpop.xlane.xlu0 %546
        %v548 = vlog2.pop %v544
        %v549 = vmul.f32 %v548, 0.6931472
        %v550 = vlog2.pop %v547
        %v551 = vmul.f32 %v550, 0.6931472
        %v552 = vadd.f32 %v532, %v549
        %v553 = vadd.f32 %v535, %v551
        %v554 = vlaneseq
        %v555 = vand.u32 %v554, 127
        %556 = vset.pattern.permute.xlu0 0
        %557 = vperm.xlu0 %556, %v414
        %v558 = vpop.permute.xlu0 %557
        %559 = vset.pattern.permute.xlu0 0
        %560 = vperm.xlu0 %559, %v415
        %v561 = vpop.permute.xlu0 %560
        %vm562 = vcmp.eq.s32.totalorder %v555, %v558
        %vm563 = vcmp.eq.s32.totalorder %v555, %v561
        %v564 = vsel %vm562, 1, 0
        %v565 = vsel %vm563, 1, 0
        %v566 = vcvt.s32.f32 %v564
        %v567 = vcvt.s32.f32 %v565
        %v568 = vmul.f32 %v566, %v525
        %v569 = vmul.f32 %v567, %v526
        %v570 = vsel %vm527, %v568, 0.0
        %571 = vadd.xlane.f32.xlu0 %v570
        %v572 = vpop.xlane.xlu0 %571
        %v573 = vsel %vm527, %v569, 0.0
        %574 = vadd.xlane.f32.xlu0 %v573
        %v575 = vpop.xlane.xlu0 %574
        %v576 = vsub.f32 %v552, %v572
        %v577 = vsub.f32 %v553, %v575
        %s578 = smul.u32 %s18, 16
        %v579 = vlaneseq
        %v580 = vshrl.u32 %v579, 7
        %v581 = vadd.s32 %v580, 8
        %v582 = vstv %s578
        %v583 = vadd.s32 %v582, %v580
        %v584 = vadd.s32 %v582, %v581
        %vm585 = vcmp.lt.s32.totalorder %v583, 32
        %vm586 = vcmp.lt.s32.totalorder %v584, 32
        %v587 = vsel %vm585, %v576, 0.0
        %v588 = vsel %vm586, %v577, 0.0
        %v589 = vadd.f32 %v587, %v588
        %v590 = vrot.slane %v589, 4
        %v591 = vadd.f32 %v589, %v590
        %v592 = vrot.slane %v591, 2
        %v593 = vadd.f32 %v591, %v592
        %v594 = vrot.slane %v593, 1
        %v595 = vadd.f32 %v593, %v594
        %v596 = vld [vmem:[#allocation7] sm:$0x1]
        %v597 = vadd.f32 %v596, %v595
        %vm598 = vcmask 0
        %599 = vst.msk [vmem:[#allocation7] sm:$0x1] %vm598, %v597
        %p600 = scmp.eq.s32.totalorder %s18, 1
        // Predicated region
        $region41: #{tpu_custom_call.1} parent=31 // pred_check
          %p601 = pneg %p600
        $region42: #{tpu_custom_call.1} parent=31 // pred_check_branch
          %603 = sbr.rel (%p601) target = $region44
        $region43: #{tpu_custom_call.1} parent=31 // pred_region
          %v604 = vld [vmem:[#allocation7] sm:$0x1]
          %v605 = vmul.f32 %v604, 0.03125
          %606 = vst.msk [vmem:[#allocation7] sm:$0x1] %vm598, %v605
        $region44: #{tpu_custom_call.1} parent=31 // pred_fallthru
          _
        %s607 = smul.u32 2, %s18
        %p608 = scmp.lt.s32.totalorder %s607, 3
        %s609 = scalar_select %p608, %s607, 3
        %s610 = smul.addr %s609, 8
        %s611 = scalar_lea.vmem %s4, %s610
        // Predicated region
        $region45: #{tpu_custom_call.1} parent=31 // pred_check
          %p612 = pneg %p104
        $region46: #{tpu_custom_call.1} parent=31 // pred_check_branch
          %614 = sbr.rel (%p612) target = $region48
        $region47: #{tpu_custom_call.1} parent=31 // pred_region
          %s616 = ssub.s32 16, 16
          %617 = vsyncadd [#allocation6], %s616
          %s619 = sshll.u32 [#allocation7], 4
          %s620 = int_to_ptr.vmem [resolvable:$true] %s619
          %622 = dma.vmem_to_hbm [thread:$0]  %s620, 16, %s3, [#allocation6]
        $region48: #{tpu_custom_call.1} parent=31 // pred_fallthru
          _
        // Predicated region
        $region49: #{tpu_custom_call.1} parent=31 // pred_check
          %p623 = pneg %p130
        $region50: #{tpu_custom_call.1} parent=31 // pred_check_branch
          %625 = sbr.rel (%p623) target = $region52
        $region51: #{tpu_custom_call.1} parent=31 // pred_region
          %s626 = smul.u32 2, %s18
        $region52: #{tpu_custom_call.1} parent=31 // pred_fallthru
          _
        // Predicated region
        $region53: #{tpu_custom_call.1} parent=31 // pred_check
          %p627 = pneg %p104
        $region54: #{tpu_custom_call.1} parent=31 // pred_check_branch
          %629 = sbr.rel (%p627) target = $region56
        $region55: #{tpu_custom_call.1} parent=31 // pred_region
          %630 = dma.done [#allocation6], 16
        $region56: #{tpu_custom_call.1} parent=31 // pred_fallthru
          _
      $region32: #{tpu_custom_call.1} parent=5 // pred_fallthru
        _
      %p631 = scmp.le.s32.totalorder 2, %s13
      // Predicated region
      $region57: #{tpu_custom_call.1} parent=5 // pred_check
        %p632 = pneg %p631
      $region58: #{tpu_custom_call.1} parent=5 // pred_check_branch
        %634 = sbr.rel (%p632) target = $region60
      $region59: #{tpu_custom_call.1} parent=5 // pred_region
        %s635 = ssub.s32 %s13, 2
        // Predicated region
        $region61: #{tpu_custom_call.1} parent=59 // pred_check
          %p636 = pneg %p136
        $region62: #{tpu_custom_call.1} parent=59 // pred_check_branch
          %638 = sbr.rel (%p636) target = $region64
        $region63: #{tpu_custom_call.1} parent=59 // pred_region
          %s639 = smul.u32 2, %s19
          %p640 = scmp.lt.s32.totalorder %s639, 3
          %s641 = scalar_select %p640, %s639, 3
          %s642 = smul.addr %s641, 8
          %s643 = scalar_lea.vmem %s4, %s642
        $region64: #{tpu_custom_call.1} parent=59 // pred_fallthru
          _
      $region60: #{tpu_custom_call.1} parent=5 // pred_fallthru
        _
    $region6: #{tpu_custom_call.1} parent=1 // loop_footer
      %s17 = sadd.s32 1, %s13
    $region7: #{tpu_custom_call.1} parent=1 // loop_footer_branch
      %12 = sbr.rel target = $region3
    $region8: #{tpu_custom_call.1} parent=1 // loop_exit
      _
    %644 = vsyncpa [#allocation5], 1
    %s645 = scalar_lea.sflag [#allocation5], 1
    %646 = vsyncpa %s645, 1
    %647 = vsyncpa [#allocation6], 1
    %s648 = scalar_lea.sflag [#allocation6], 1
    %649 = vsyncpa %s648, 1

</llo_original>
